<compile_context>
chip_gen: v7x
topology: tpu7x:2x2x1
jax: 0.10.0
libtpu: 0.0.40
codegen_flags: <defaults>
</compile_context>

<pallas_src>
import math

import jax
import jax.numpy as jnp
from jax import lax
from jax.experimental import pallas as pl
from jax.experimental.pallas import tpu as pltpu


# ------------------------------ small helpers ------------------------------ #

def _round_up(x, m):
    return ((x + m - 1) // m) * m


def _sublane_multiple(dtype):
    # sublane packing: f32 -> 8, bf16 -> 16, int8/fp8 -> 32
    return {4: 8, 2: 16, 1: 32}.get(jnp.dtype(dtype).itemsize, 8)


def _balanced_tile(dim, max_tile, align):
    """Largest aligned tile <= max_tile that splits `dim` into equal-ish pieces
    (avoids e.g. padding M=300 to 512 with a fixed 256 tile)."""
    max_tile = max(_round_up(max_tile, align), align)
    dim_a = _round_up(dim, align)
    if dim_a <= max_tile:
        return dim_a
    n_tiles = -(-dim_a // max_tile)                    # ceil
    return _round_up(-(-dim_a // n_tiles), align)


def _vmem_budget_bytes():
    """Per-generation VMEM budget (v7x: 64 MiB physical; v5e/v6e: 128 MiB)."""
    cap = 64 * 1024 * 1024                             # conservative fallback (v7x)
    try:
        cap = int(getattr(pltpu.get_tpu_info(), "vmem_capacity_bytes", cap)) or cap
    except Exception:
        pass
    return min(cap * 3 // 4, 112 * 1024 * 1024)


# --------------------------------- kernels --------------------------------- #

def _dense_kernel(x_ref, w_ref, o_ref, acc_ref):
    """One (tm, tn) output tile; K is the innermost ('arbitrary') grid axis.
    x_ref: (tm, tk);  w_ref: (tn, tk) slice of the native (out, in) weight."""
    @pl.when(pl.program_id(2) == 0)
    def _init():
        acc_ref[...] = jnp.zeros_like(acc_ref)

    acc_ref[...] += lax.dot_general(
        x_ref[...], w_ref[...],
        dimension_numbers=(((1,), (1,)), ((), ())),    # x @ w.T
        preferred_element_type=jnp.float32)

    @pl.when(pl.program_id(2) == pl.num_programs(2) - 1)
    def _store():
        o_ref[...] = acc_ref[...].astype(o_ref.dtype)


def _lowrank_kernel(x_ref, w_ref, a_ref, b_ref, o_ref, acc_ref, low_ref):
    """Dense tile + low-rank correction.

    a_ref: (r_pad, tk) slice of A (r, in);  b_ref: (tn, r_pad) slice of B (out, r).
    low_ref: (tm, r_pad) f32 scratch holding x @ A.T — accumulated over K only on the
    first N tile (j == 0) and reused from VMEM for every other N tile of the same
    M tile (the j grid axis is marked 'arbitrary' so it stays on one core).
    """
    j = pl.program_id(1)
    k = pl.program_id(2)

    @pl.when(k == 0)
    def _init_acc():
        acc_ref[...] = jnp.zeros_like(acc_ref)

    @pl.when(jnp.logical_and(j == 0, k == 0))
    def _init_low():
        low_ref[...] = jnp.zeros_like(low_ref)

    x = x_ref[...]
    acc_ref[...] += lax.dot_general(
        x, w_ref[...], dimension_numbers=(((1,), (1,)), ((), ())),
        preferred_element_type=jnp.float32)

    @pl.when(j == 0)
    def _acc_low():
        # x @ A.T is identical for every N tile -> only compute it once (j == 0).
        low_ref[...] += lax.dot_general(
            x, a_ref[...], dimension_numbers=(((1,), (1,)), ((), ())),
            preferred_element_type=jnp.float32)

    @pl.when(k == pl.num_programs(2) - 1)
    def _store():
        # Cast the intermediate back to the input dtype to mirror the chained
        # F.linear semantics (no-op for f32 inputs).
        low = low_ref[...].astype(x_ref.dtype)
        out = acc_ref[...] + lax.dot_general(
            low, b_ref[...], dimension_numbers=(((1,), (1,)), ((), ())),
            preferred_element_type=jnp.float32)
        o_ref[...] = out.astype(o_ref.dtype)


# --------------------------------- wrapper --------------------------------- #

def fold_lowrank_into_weight(weight, lowrank_first, lowrank_second):
    """W_eff = W + B @ A.  Call once at parameter-prep / load time, NOT per forward:
    folding per call adds a full read+write of the weight to every step."""
    delta = jnp.dot(lowrank_second, lowrank_first, precision=lax.Precision.HIGHEST)
    return (weight + delta).astype(weight.dtype)


def generalized_matrix_forward(x, weight, lowrank_first=None, lowrank_second=None, *,
                               ignore_lowrank=False, fold_lowrank=False,
                               tile_m=512, tile_n=512, tile_k=1024):
    """x: (..., in_features); weight: (out, in) in its native layout;
    lowrank_first: (r, in); lowrank_second: (out, r).

    Default tiles (512/512/1024) are MXU-cadence friendly (multiples of 256) and fit
    comfortably within the VMEM budget of every generation; they are shrunk
    automatically if the double-buffered working set would exceed it.
    """
    out_features, in_features = weight.shape
    orig_shape = x.shape
    x2d = x.reshape(-1, in_features)
    M, K, N = x2d.shape[0], in_features, out_features
    dtype = x.dtype
    itemsize = jnp.dtype(dtype).itemsize

    use_lowrank = (lowrank_first is not None) and (not ignore_lowrank)
    if use_lowrank and fold_lowrank:
        # Prefer fold_lowrank_into_weight() at load time; per-call folding roughly
        # triples weight HBM traffic (read W, write W_eff, kernel reads W_eff).
        weight = fold_lowrank_into_weight(weight, lowrank_first, lowrank_second)
        use_lowrank = False

    sub = _sublane_multiple(dtype)

    # Decode-style small-M shapes: collapse M, grow N/K tiles to cut grid steps.
    if _round_up(M, sub) <= 256:
        tile_m = 256
        tile_n = max(tile_n, 1024)
        tile_k = max(tile_k, 2048)

    tm = _balanced_tile(M, tile_m, sub)
    tn = _balanced_tile(N, tile_n, 128)
    tk = _balanced_tile(K, tile_k, 128)

    r_pad = 0
    if use_lowrank:
        r_pad = _round_up(max(lowrank_first.shape[0], 1), 128)

    # Shrink tiles if the double-buffered working set exceeds this chip's VMEM budget.
    budget = _vmem_budget_bytes()

    def _needed_bytes():
        b = 2 * (tm * tk + tn * tk + tm * tn) * itemsize + tm * tn * 4
        if use_lowrank:
            b += 2 * (r_pad * tk + tn * r_pad) * itemsize + tm * r_pad * 4
        return b

    while _needed_bytes() > budget and tk > 512:
        tk = max(_round_up(tk // 2, 128), 128)
    while _needed_bytes() > budget and tn > 256:
        tn = max(_round_up(tn // 2, 128), 128)
    while _needed_bytes() > budget and tm > 256:
        tm = max(_round_up(tm // 2, sub), sub)

    M_pad, N_pad, K_pad = _round_up(M, tm), _round_up(N, tn), _round_up(K, tk)

    # v7x has 2 TensorCores: make sure at least one 'parallel' axis has >= 2 blocks.
    if (not use_lowrank) and M_pad // tm == 1 and N_pad // tn == 1 and tn % 256 == 0:
        tn //= 2   # N_pad unchanged (tn halves evenly, stays 128-aligned)

    x_p = x2d if (M_pad, K_pad) == (M, K) else jnp.pad(
        x2d, ((0, M_pad - M), (0, K_pad - K)))
    # Weight stays in its native (out, in) layout: no host-side transpose per call.
    w_p = weight if (N_pad, K_pad) == (N, K) else jnp.pad(
        weight, ((0, N_pad - N), (0, K_pad - K)))

    grid = (M_pad // tm, N_pad // tn, K_pad // tk)
    gm, gn, gk = grid

    vmem_limit = int(max(32 * 1024 * 1024,
                         min(budget, 2 * _needed_bytes() + (8 << 20))))

    flops = 2 * M_pad * N_pad * K_pad
    bytes_accessed = (M_pad * K_pad * gn + N_pad * K_pad * gm + M_pad * N_pad) * itemsize

    if use_lowrank:
        r = lowrank_first.shape[0]
        a_p = jnp.pad(lowrank_first.astype(dtype),
                      ((0, r_pad - r), (0, K_pad - K)))        # (r_pad, K_pad)
        b_p = jnp.pad(lowrank_second.astype(dtype),
                      ((0, N_pad - N), (0, r_pad - r)))        # (N_pad, r_pad)
        flops += 2 * M_pad * K_pad * r_pad + 2 * M_pad * r_pad * N_pad
        bytes_accessed += (a_p.size + b_p.size) * itemsize

        out_p = pl.pallas_call(
            _lowrank_kernel,
            out_shape=jax.ShapeDtypeStruct((M_pad, N_pad), dtype),
            grid=grid,
            in_specs=[
                pl.BlockSpec((tm, tk), lambda i, j, k: (i, k)),      # x
                pl.BlockSpec((tn, tk), lambda i, j, k: (j, k)),      # weight (out, in)
                pl.BlockSpec((r_pad, tk), lambda i, j, k: (0, k)),   # A (r, in)
                pl.BlockSpec((tn, r_pad), lambda i, j, k: (j, 0)),   # B (out, r)
            ],
            out_specs=pl.BlockSpec((tm, tn), lambda i, j, k: (i, j)),
            scratch_shapes=[pltpu.VMEM((tm, tn), jnp.float32),
                            pltpu.VMEM((tm, r_pad), jnp.float32)],
            compiler_params=pltpu.CompilerParams(
                # j must stay on one core: low_ref (x @ A.T) is accumulated only at
                # j == 0 and reused from VMEM scratch for every other N tile.
                dimension_semantics=("parallel", "arbitrary", "arbitrary"),
                vmem_limit_bytes=vmem_limit),
            cost_estimate=pl.CostEstimate(flops=int(flops), transcendentals=0,
                                          bytes_accessed=int(bytes_accessed)),
        )(x_p, w_p, a_p, b_p)
    else:
        out_p = pl.pallas_call(
            _dense_kernel,
            out_shape=jax.ShapeDtypeStruct((M_pad, N_pad), dtype),
            grid=grid,
            in_specs=[
                pl.BlockSpec((tm, tk), lambda i, j, k: (i, k)),      # x
                pl.BlockSpec((tn, tk), lambda i, j, k: (j, k)),      # weight (out, in)
            ],
            out_specs=pl.BlockSpec((tm, tn), lambda i, j, k: (i, j)),
            scratch_shapes=[pltpu.VMEM((tm, tn), jnp.float32)],
            compiler_params=pltpu.CompilerParams(
                dimension_semantics=("parallel", "parallel", "arbitrary"),
                vmem_limit_bytes=vmem_limit),
            cost_estimate=pl.CostEstimate(flops=int(flops), transcendentals=0,
                                          bytes_accessed=int(bytes_accessed)),
        )(x_p, w_p)

    out2d = out_p[:M, :N]
    return out2d.reshape(*orig_shape[:-1], N)


# ------------------------------ init / reference --------------------------- #

def init_generalized_matrix_params(key, in_features, out_features, lowrank_dim=0,
                                   dtype=jnp.float32):
    """Deterministic parameter init mirroring the PyTorch __init__ (block_size=0)."""
    k_w, k_a, k_b = jax.random.split(key, 3)
    # kaiming_uniform_(a=sqrt(5)) on (out, in): bound = 1/sqrt(fan_in)
    bound = 1.0 / math.sqrt(in_features)
    weight = jax.random.uniform(k_w, (out_features, in_features), dtype,
                                minval=-bound, maxval=bound)
    if lowrank_dim:
        std = math.sqrt(2.0 / (5 * min(out_features, in_features)))
        lowrank_first = std * jax.random.normal(k_a, (lowrank_dim, in_features), dtype)
        lowrank_second = std * jax.random.normal(k_b, (out_features, lowrank_dim), dtype)
    else:
        lowrank_first = lowrank_second = None
    return weight, lowrank_first, lowrank_second


def _reference_forward(x, weight, lowrank_first=None, lowrank_second=None,
                       *, ignore_lowrank=False):
    hp = lax.Precision.HIGHEST
    out = jnp.einsum("...k,nk->...n", x, weight, precision=hp)
    if lowrank_first is not None and not ignore_lowrank:
        low = jnp.einsum("...k,rk->...r", x, lowrank_first, precision=hp)
        out = out + jnp.einsum("...r,nr->...n", low, lowrank_second, precision=hp)
    return out


# ----------------------------------- main ----------------------------------- #

if __name__ == "__main__":
    key = jax.random.PRNGKey(0)
    k_x, k_p, k_x2, k_p2 = jax.random.split(key, 4)

    # ---- small case (single-tile grid, small-M path) ------------------------
    in_features, out_features, lowrank_dim = 32, 48, 8
    batch, seq = 2, 8
    x = jax.random.normal(k_x, (batch, seq, in_features), jnp.float32)
    weight, lr_a, lr_b = init_generalized_matrix_params(
        k_p, in_features, out_features, lowrank_dim)

    ref = _reference_forward(x, weight, lr_a, lr_b)

    out_sep = jax.block_until_ready(
        generalized_matrix_forward(x, weight, lr_a, lr_b))            # in-kernel low-rank
    assert out_sep.shape == (batch, seq, out_features)
    assert jnp.allclose(out_sep, ref, atol=1e-4, rtol=1e-4), "in-kernel low-rank mismatch"

    w_eff = fold_lowrank_into_weight(weight, lr_a, lr_b)              # fold at "load time"
    out_fold = jax.block_until_ready(generalized_matrix_forward(x, w_eff))
    assert jnp.allclose(out_fold, ref, atol=1e-4, rtol=1e-4), "prefolded weight mismatch"

    out_fold2 = jax.block_until_ready(
        generalized_matrix_forward(x, weight, lr_a, lr_b, fold_lowrank=True))
    assert jnp.allclose(out_fold2, ref, atol=1e-4, rtol=1e-4), "per-call fold mismatch"

    out_dense = jax.block_until_ready(
        generalized_matrix_forward(x, weight, lr_a, lr_b, ignore_lowrank=True))
    ref_dense = _reference_forward(x, weight, None, None)
    assert jnp.allclose(out_dense, ref_dense, atol=1e-4, rtol=1e-4), "dense path mismatch"

    # ---- multi-tile case (exercises (M,N,K) grid, K accumulation, and the
    # ---- j>0 reuse of the low-rank scratch) ---------------------------------
    in_features2, out_features2, lowrank_dim2 = 1024, 384, 8
    batch2, seq2 = 2, 144   # M = 288
    x2 = jax.random.normal(k_x2, (batch2, seq2, in_features2), jnp.float32)
    w2, a2, b2 = init_generalized_matrix_params(
        k_p2, in_features2, out_features2, lowrank_dim2)

    ref2 = _reference_forward(x2, w2, a2, b2)

    # default (large) tiles, single grid step
    out2_big = jax.block_until_ready(generalized_matrix_forward(x2, w2, a2, b2))
    assert jnp.allclose(out2_big, ref2, atol=2e-3, rtol=2e-3), "big-tile low-rank mismatch"

    # forced small tiles -> grid (3, 3, 4): K accumulation + N-tile scratch reuse
    out2_sep = jax.block_until_ready(
        generalized_matrix_forward(x2, w2, a2, b2,
                                   tile_m=128, tile_n=128, tile_k=256))
    assert jnp.allclose(out2_sep, ref2, atol=2e-3, rtol=2e-3), "multi-tile low-rank mismatch"

    # prefolded weight, dense multi-tile path
    w2_eff = fold_lowrank_into_weight(w2, a2, b2)
    out2_fold = jax.block_until_ready(
        generalized_matrix_forward(x2, w2_eff, tile_m=128, tile_n=128, tile_k=256))
    assert jnp.allclose(out2_fold, ref2, atol=2e-3, rtol=2e-3), "multi-tile dense mismatch"

    print("KERNEL_OK")
</pallas_src>

<mosaic_0001>
module attributes {stable_mosaic.version = 11 : i64} {
  func.func @_lowrank_kernel(%arg0: i32, %arg1: i32, %arg2: i32, %arg3: memref<16x128xf32, #tpu.memory_space<vmem>>, %arg4: memref<128x128xf32, #tpu.memory_space<vmem>>, %arg5: memref<128x128xf32, #tpu.memory_space<vmem>>, %arg6: memref<128x128xf32, #tpu.memory_space<vmem>>, %arg7: memref<16x128xf32, #tpu.memory_space<vmem>>, %arg8: memref<16x128xf32, #tpu.memory_space<vmem>>, %arg9: memref<16x128xf32, #tpu.memory_space<vmem>>) attributes {dimension_semantics = [#tpu.dimension_semantics<parallel>, #tpu.dimension_semantics<arbitrary>, #tpu.dimension_semantics<arbitrary>], iteration_bounds = array<i64: 1, 1, 1>, scalar_prefetch = 0 : i64, scratch_operands = 2 : i64, tpu.core_type = #tpu.core_type<tc>, window_params = [{transform_indices = @transform_0, window_bounds = array<i64: 16, 128>}, {transform_indices = @transform_1, window_bounds = array<i64: 128, 128>}, {transform_indices = @transform_2, window_bounds = array<i64: 128, 128>}, {transform_indices = @transform_3, window_bounds = array<i64: 128, 128>}, {transform_indices = @transform_4, window_bounds = array<i64: 16, 128>}]} {
    %c0_i32 = arith.constant 0 : i32
    %0 = arith.cmpi eq, %arg2, %c0_i32 : i32
    %1 = arith.extui %0 : i1 to i32
    %c0_i32_0 = arith.constant 0 : i32
    %2 = arith.cmpi ne, %1, %c0_i32_0 : i32
    scf.if %2 {
      %cst_15 = arith.constant 0.000000e+00 : f32
      %20 = vector.broadcast %cst_15 : f32 to vector<16x128xf32>
      %c0_16 = arith.constant 0 : index
      %c0_17 = arith.constant 0 : index
      %21 = vector.load %arg8[%c0_16, %c0_17] : memref<16x128xf32, #tpu.memory_space<vmem>>, vector<16x128xf32>
      tpu.vector_store %arg8[%c0_16, %c0_17], %20 {strides = array<i32>} : memref<16x128xf32, #tpu.memory_space<vmem>>, vector<16x128xf32>,
    } else {
    }
    %c0_i32_1 = arith.constant 0 : i32
    %3 = arith.cmpi eq, %arg1, %c0_i32_1 : i32
    %c0_i32_2 = arith.constant 0 : i32
    %4 = arith.cmpi eq, %arg2, %c0_i32_2 : i32
    %5 = arith.andi %3, %4 : i1
    %6 = arith.extui %5 : i1 to i32
    %c0_i32_3 = arith.constant 0 : i32
    %7 = arith.cmpi ne, %6, %c0_i32_3 : i32
    scf.if %7 {
      %cst_15 = arith.constant 0.000000e+00 : f32
      %20 = vector.broadcast %cst_15 : f32 to vector<16x128xf32>
      %c0_16 = arith.constant 0 : index
      %c0_17 = arith.constant 0 : index
      %21 = vector.load %arg9[%c0_16, %c0_17] : memref<16x128xf32, #tpu.memory_space<vmem>>, vector<16x128xf32>
      tpu.vector_store %arg9[%c0_16, %c0_17], %20 {strides = array<i32>} : memref<16x128xf32, #tpu.memory_space<vmem>>, vector<16x128xf32>,
    } else {
    }
    %c0 = arith.constant 0 : index
    %c0_4 = arith.constant 0 : index
    %8 = vector.load %arg3[%c0, %c0_4] : memref<16x128xf32, #tpu.memory_space<vmem>>, vector<16x128xf32>
    %c0_5 = arith.constant 0 : index
    %c0_6 = arith.constant 0 : index
    %9 = vector.load %arg8[%c0_5, %c0_6] : memref<16x128xf32, #tpu.memory_space<vmem>>, vector<16x128xf32>
    %c0_7 = arith.constant 0 : index
    %c0_8 = arith.constant 0 : index
    %10 = vector.load %arg4[%c0_7, %c0_8] : memref<128x128xf32, #tpu.memory_space<vmem>>, vector<128x128xf32>
    %cst = arith.constant dense<0.000000e+00> : vector<16x128xf32>
    %11 = tpu.matmul %8, %10, %cst {dimension_numbers = #tpu.dot_dimension_numbers<[1], [1], [0], [0], [0, 0, 1, 0], [], []>} : vector<16x128xf32>, vector<128x128xf32>, vector<16x128xf32> -> vector<16x128xf32>
    %12 = arith.addf %9, %11 : vector<16x128xf32>
    %c0_9 = arith.constant 0 : index
    %c0_10 = arith.constant 0 : index
    %13 = vector.load %arg8[%c0_9, %c0_10] : memref<16x128xf32, #tpu.memory_space<vmem>>, vector<16x128xf32>
    tpu.vector_store %arg8[%c0_9, %c0_10], %12 {strides = array<i32>} : memref<16x128xf32, #tpu.memory_space<vmem>>, vector<16x128xf32>,
    %c0_i32_11 = arith.constant 0 : i32
    %14 = arith.cmpi eq, %arg1, %c0_i32_11 : i32
    %15 = arith.extui %14 : i1 to i32
    %c0_i32_12 = arith.constant 0 : i32
    %16 = arith.cmpi ne, %15, %c0_i32_12 : i32
    scf.if %16 {
      %c0_15 = arith.constant 0 : index
      %c0_16 = arith.constant 0 : index
      %20 = vector.load %arg9[%c0_15, %c0_16] : memref<16x128xf32, #tpu.memory_space<vmem>>, vector<16x128xf32>
      %c0_17 = arith.constant 0 : index
      %c0_18 = arith.constant 0 : index
      %21 = vector.load %arg5[%c0_17, %c0_18] : memref<128x128xf32, #tpu.memory_space<vmem>>, vector<128x128xf32>
      %cst_19 = arith.constant dense<0.000000e+00> : vector<16x128xf32>
      %22 = tpu.matmul %8, %21, %cst_19 {dimension_numbers = #tpu.dot_dimension_numbers<[1], [1], [0], [0], [0, 0, 1, 0], [], []>} : vector<16x128xf32>, vector<128x128xf32>, vector<16x128xf32> -> vector<16x128xf32>
      %23 = arith.addf %20, %22 : vector<16x128xf32>
      %c0_20 = arith.constant 0 : index
      %c0_21 = arith.constant 0 : index
      %24 = vector.load %arg9[%c0_20, %c0_21] : memref<16x128xf32, #tpu.memory_space<vmem>>, vector<16x128xf32>
      tpu.vector_store %arg9[%c0_20, %c0_21], %23 {strides = array<i32>} : memref<16x128xf32, #tpu.memory_space<vmem>>, vector<16x128xf32>,
    } else {
    }
    %c0_i32_13 = arith.constant 0 : i32
    %17 = arith.cmpi eq, %arg2, %c0_i32_13 : i32
    %18 = arith.extui %17 : i1 to i32
    %c0_i32_14 = arith.constant 0 : i32
    %19 = arith.cmpi ne, %18, %c0_i32_14 : i32
    scf.if %19 {
      %c0_15 = arith.constant 0 : index
      %c0_16 = arith.constant 0 : index
      %20 = vector.load %arg9[%c0_15, %c0_16] : memref<16x128xf32, #tpu.memory_space<vmem>>, vector<16x128xf32>
      %c0_17 = arith.constant 0 : index
      %c0_18 = arith.constant 0 : index
      %21 = vector.load %arg8[%c0_17, %c0_18] : memref<16x128xf32, #tpu.memory_space<vmem>>, vector<16x128xf32>
      %c0_19 = arith.constant 0 : index
      %c0_20 = arith.constant 0 : index
      %22 = vector.load %arg6[%c0_19, %c0_20] : memref<128x128xf32, #tpu.memory_space<vmem>>, vector<128x128xf32>
      %cst_21 = arith.constant dense<0.000000e+00> : vector<16x128xf32>
      %23 = tpu.matmul %20, %22, %cst_21 {dimension_numbers = #tpu.dot_dimension_numbers<[1], [1], [0], [0], [0, 0, 1, 0], [], []>} : vector<16x128xf32>, vector<128x128xf32>, vector<16x128xf32> -> vector<16x128xf32>
      %24 = arith.addf %21, %23 : vector<16x128xf32>
      %c0_22 = arith.constant 0 : index
      %c0_23 = arith.constant 0 : index
      %25 = vector.load %arg7[%c0_22, %c0_23] : memref<16x128xf32, #tpu.memory_space<vmem>>, vector<16x128xf32>
      tpu.vector_store %arg7[%c0_22, %c0_23], %24 {strides = array<i32>} : memref<16x128xf32, #tpu.memory_space<vmem>>, vector<16x128xf32>,
    } else {
    }
    return
  }
  func.func @transform_0(%arg0: i32, %arg1: i32, %arg2: i32) -> (i32, i32) {
    %c0_i32 = arith.constant 0 : i32
    return %arg0, %arg2 : i32, i32
  }
  func.func @transform_1(%arg0: i32, %arg1: i32, %arg2: i32) -> (i32, i32) {
    %c0_i32 = arith.constant 0 : i32
    return %arg1, %arg2 : i32, i32
  }
  func.func @transform_2(%arg0: i32, %arg1: i32, %arg2: i32) -> (i32, i32) {
    %c0_i32 = arith.constant 0 : i32
    %c0_i32_0 = arith.constant 0 : i32
    return %c0_i32, %arg2 : i32, i32
  }
  func.func @transform_3(%arg0: i32, %arg1: i32, %arg2: i32) -> (i32, i32) {
    %c0_i32 = arith.constant 0 : i32
    %c0_i32_0 = arith.constant 0 : i32
    return %arg1, %c0_i32 : i32, i32
  }
  func.func @transform_4(%arg0: i32, %arg1: i32, %arg2: i32) -> (i32, i32) {
    %c0_i32 = arith.constant 0 : i32
    return %arg0, %arg1 : i32, i32
  }
}

</mosaic_0001>

<llo_original>
// kernel: tpu_custom_call.1
$region0: #{tpu_custom_call.1}
  #allocation0 [shape = 'u32[]', space=smem, size = 0x4, offset = 0x4, fixed_abs, tag = 'smem constant byte address 0x4 - core index']
  #allocation1 [shape = 'u32[144,128]{1,0:T(1,128)}', space=vmem, size = 0x12000, scoped, tag = 'internal scratch']
  #allocation2 [shape = 'f32[16,128]{1,0:T(8,128)}', space=vmem, size = 0x2000, scoped, tag = 'scratch operand']
  #allocation3 [shape = 'f32[16,128]{1,0:T(8,128)}', space=vmem, size = 0x2000, scoped, tag = 'scratch operand']
  %s0 = inlined_call_operand.hbm [shape: f32[16,128], index: 0, kind: input, shape index: {}]
  %s1 = inlined_call_operand.hbm [shape: f32[128,128], index: 1, kind: input, shape index: {}]
  %s2 = inlined_call_operand.hbm [shape: f32[128,128], index: 2, kind: input, shape index: {}]
  %s3 = inlined_call_operand.hbm [shape: f32[128,128], index: 3, kind: input, shape index: {}]
  %s4 = inlined_call_operand.hbm [shape: f32[16,128], index: 4, kind: output, shape index: {}]
  %s5 = sld [smem:[#allocation0]]
  $region58: #{tpu_custom_call.1} parent=0
    _
  %s7 = ssub.s32 1, %s5
  %s8 = scalar_select 0, %s7, %s5
  $region1: #{tpu_custom_call.1} parent=0
    #allocation4 [shape = 'u8[8192]{0}', space=vmem, size = 0x2000, scoped, tag = 'input window, operand 0, single buffered']
    #allocation5 [shape = 's32[1]{0}', space=sflag, size = 0x4, scoped, tag = 'scoped memory for tpu_custom_call.1']
    #allocation6 [shape = 's32[1]{0}', space=sflag, size = 0x4, scoped, tag = 'scoped memory for tpu_custom_call.1']
    #allocation7 [shape = 'u8[65536]{0}', space=vmem, size = 0x10000, scoped, tag = 'input window, operand 1, single buffered']
    #allocation8 [shape = 's32[1]{0}', space=sflag, size = 0x4, scoped, tag = 'scoped memory for tpu_custom_call.1']
    #allocation9 [shape = 'u8[65536]{0}', space=vmem, size = 0x10000, scoped, tag = 'input window, operand 2, single buffered']
    #allocation10 [shape = 'u8[65536]{0}', space=vmem, size = 0x10000, scoped, tag = 'input window, operand 3, single buffered']
    #allocation11 [shape = 's32[1]{0}', space=sflag, size = 0x4, scoped, tag = 'scoped memory for tpu_custom_call.1']
    #allocation12 [shape = 'u8[8192]{0}', space=vmem, size = 0x2000, scoped, tag = 'output window, operand 0, single buffered']
    %9 = vsyncpa [#allocation5], 0
    %10 = vsyncpa [#allocation8], 0
    %11 = vsyncpa [#allocation11], 0
    %12 = vsyncpa [#allocation6], 0
    // Predicated region
    $region2: #{tpu_custom_call.1} parent=1 // pred_check
      _
    $region3: #{tpu_custom_call.1} parent=1 // pred_check_branch
      %14 = sbr.rel (0) target = $region5
    $region4: #{tpu_custom_call.1} parent=1 // pred_region
      %s16 = ssub.s32 256, 256
      %17 = vsyncadd [#allocation5], %s16
      %s18 = sshll.u32 [#allocation4], 4
      %s19 = int_to_ptr.vmem [resolvable:$true] %s18
      %24 = dma.hbm_to_vmem [thread:$0]  %s0, 256, %s19, [#allocation5], 128, 128, 8
    $region5: #{tpu_custom_call.1} parent=1 // pred_fallthru
      _
    // Predicated region
    $region6: #{tpu_custom_call.1} parent=1 // pred_check
      _
    $region7: #{tpu_custom_call.1} parent=1 // pred_check_branch
      %26 = sbr.rel (0) target = $region9
    $region8: #{tpu_custom_call.1} parent=1 // pred_region
      %s28 = ssub.s32 2048, 2048
      %29 = vsyncadd [#allocation8], %s28
      %s30 = sshll.u32 [#allocation7], 4
      %s31 = int_to_ptr.vmem [resolvable:$true] %s30
      %36 = dma.hbm_to_vmem [thread:$0]  %s1, 2048, %s31, [#allocation8], 128, 128, 8
    $region9: #{tpu_custom_call.1} parent=1 // pred_fallthru
      _
    // Predicated region
    $region10: #{tpu_custom_call.1} parent=1 // pred_check
      _
    $region11: #{tpu_custom_call.1} parent=1 // pred_check_branch
      %38 = sbr.rel (0) target = $region13
    $region12: #{tpu_custom_call.1} parent=1 // pred_region
      %s40 = ssub.s32 2048, 2048
      %41 = vsyncadd [#allocation8], %s40
      %s42 = sshll.u32 [#allocation9], 4
      %s43 = int_to_ptr.vmem [resolvable:$true] %s42
      %48 = dma.hbm_to_vmem [thread:$0]  %s2, 2048, %s43, [#allocation8], 128, 128, 8
    $region13: #{tpu_custom_call.1} parent=1 // pred_fallthru
      _
    // Predicated region
    $region14: #{tpu_custom_call.1} parent=1 // pred_check
      _
    $region15: #{tpu_custom_call.1} parent=1 // pred_check_branch
      %50 = sbr.rel (0) target = $region17
    $region16: #{tpu_custom_call.1} parent=1 // pred_region
      %s52 = ssub.s32 2048, 2048
      %53 = vsyncadd [#allocation11], %s52
      %s54 = sshll.u32 [#allocation10], 4
      %s55 = int_to_ptr.vmem [resolvable:$true] %s54
      %60 = dma.hbm_to_vmem [thread:$0]  %s3, 2048, %s55, [#allocation11], 128, 128, 8
    $region17: #{tpu_custom_call.1} parent=1 // pred_fallthru
      _
    // Predicated region
    $region18: #{tpu_custom_call.1} parent=1 // pred_check
      _
    $region19: #{tpu_custom_call.1} parent=1 // pred_check_branch
      %62 = sbr.rel (0) target = $region21
    $region20: #{tpu_custom_call.1} parent=1 // pred_region
      %63 = dma.done [#allocation5], 256
    $region21: #{tpu_custom_call.1} parent=1 // pred_fallthru
      _
    // Predicated region
    $region22: #{tpu_custom_call.1} parent=1 // pred_check
      _
    $region23: #{tpu_custom_call.1} parent=1 // pred_check_branch
      %65 = sbr.rel (0) target = $region25
    $region24: #{tpu_custom_call.1} parent=1 // pred_region
      %66 = dma.done [#allocation8], 2048
    $region25: #{tpu_custom_call.1} parent=1 // pred_fallthru
      _
    // Predicated region
    $region26: #{tpu_custom_call.1} parent=1 // pred_check
      _
    $region27: #{tpu_custom_call.1} parent=1 // pred_check_branch
      %68 = sbr.rel (0) target = $region29
    $region28: #{tpu_custom_call.1} parent=1 // pred_region
      %69 = dma.done [#allocation8], 2048
    $region29: #{tpu_custom_call.1} parent=1 // pred_fallthru
      _
    // Predicated region
    $region30: #{tpu_custom_call.1} parent=1 // pred_check
      _
    $region31: #{tpu_custom_call.1} parent=1 // pred_check_branch
      %71 = sbr.rel (0) target = $region33
    $region32: #{tpu_custom_call.1} parent=1 // pred_region
      %72 = dma.done [#allocation11], 2048
    $region33: #{tpu_custom_call.1} parent=1 // pred_fallthru
      _
    %p73 = scmp.eq.s32.totalorder 0, 0
    // Predicated region
    $region34: #{tpu_custom_call.1} parent=1 // pred_check
      %p74 = pneg %p73
    $region35: #{tpu_custom_call.1} parent=1 // pred_check_branch
      %76 = sbr.rel (%p74) target = $region37
    $region36: #{tpu_custom_call.1} parent=1 // pred_region
      %77 = vst [vmem:[#allocation2] sm:$0xff] 0.0
      %78 = vst [vmem:[#allocation2 + $0x8] sm:$0xff] 0.0
    $region37: #{tpu_custom_call.1} parent=1 // pred_fallthru
      _
    %p79 = scmp.eq.s32.totalorder 0, 0
    %p80 = pnand %p79, %p73
    %p81 = pneg %p80
    // Predicated region
    $region38: #{tpu_custom_call.1} parent=1 // pred_check
      _
    $region39: #{tpu_custom_call.1} parent=1 // pred_check_branch
      %83 = sbr.rel (%p80) target = $region41
    $region40: #{tpu_custom_call.1} parent=1 // pred_region
      %84 = vst [vmem:[#allocation3] sm:$0xff] 0.0
      %85 = vst [vmem:[#allocation3 + $0x8] sm:$0xff] 0.0
    $region41: #{tpu_custom_call.1} parent=1 // pred_fallthru
      _
    %v86 = vld [vmem:[#allocation4] sm:$0xff]
    %v87 = vld [vmem:[#allocation4 + $0x8] sm:$0xff]
    %v88 = vld [vmem:[#allocation2] sm:$0xff]
    %v89 = vld [vmem:[#allocation2 + $0x8] sm:$0xff]
    %v90 = vld [vmem:[#allocation7] sm:$0xff]
    %v91 = vld [vmem:[#allocation7 + $0x8] sm:$0xff]
    %v92 = vld [vmem:[#allocation7 + $0x10] sm:$0xff]
    %v93 = vld [vmem:[#allocation7 + $0x18] sm:$0xff]
    %v94 = vld [vmem:[#allocation7 + $0x20] sm:$0xff]
    %v95 = vld [vmem:[#allocation7 + $0x28] sm:$0xff]
    %v96 = vld [vmem:[#allocation7 + $0x30] sm:$0xff]
    %v97 = vld [vmem:[#allocation7 + $0x38] sm:$0xff]
    %v98 = vld [vmem:[#allocation7 + $0x40] sm:$0xff]
    %v99 = vld [vmem:[#allocation7 + $0x48] sm:$0xff]
    %v100 = vld [vmem:[#allocation7 + $0x50] sm:$0xff]
    %v101 = vld [vmem:[#allocation7 + $0x58] sm:$0xff]
    %v102 = vld [vmem:[#allocation7 + $0x60] sm:$0xff]
    %v103 = vld [vmem:[#allocation7 + $0x68] sm:$0xff]
    %v104 = vld [vmem:[#allocation7 + $0x70] sm:$0xff]
    %v105 = vld [vmem:[#allocation7 + $0x78] sm:$0xff]
    %106 = vmatprep.subr.mxu0 0.0
    %107 = vmatpush1.xpose.msra.mxu0 %v90
    %108 = vmatprep.subr.mxu0 0.0
    %109 = vmatpush1.xpose.msra.mxu0 %v91
    %110 = vmatprep.subr.mxu0 0.0
    %111 = vmatpush1.xpose.msra.mxu0 %v92
    %112 = vmatprep.subr.mxu0 0.0
    %113 = vmatpush1.xpose.msra.mxu0 %v93
    %114 = vmatprep.subr.mxu0 0.0
    %115 = vmatpush1.xpose.msra.mxu0 %v94
    %116 = vmatprep.subr.mxu0 0.0
    %117 = vmatpush1.xpose.msra.mxu0 %v95
    %118 = vmatprep.subr.mxu0 0.0
    %119 = vmatpush1.xpose.msra.mxu0 %v96
    %120 = vmatprep.subr.mxu0 0.0
    %121 = vmatpush1.xpose.msra.mxu0 %v97
    %122 = vmatprep.subr.mxu0 0.0
    %123 = vmatpush1.xpose.msra.mxu0 %v98
    %124 = vmatprep.subr.mxu0 0.0
    %125 = vmatpush1.xpose.msra.mxu0 %v99
    %126 = vmatprep.subr.mxu0 0.0
    %127 = vmatpush1.xpose.msra.mxu0 %v100
    %128 = vmatprep.subr.mxu0 0.0
    %129 = vmatpush1.xpose.msra.mxu0 %v101
    %130 = vmatprep.subr.mxu0 0.0
    %131 = vmatpush1.xpose.msra.mxu0 %v102
    %132 = vmatprep.subr.mxu0 0.0
    %133 = vmatpush1.xpose.msra.mxu0 %v103
    %134 = vmatprep.subr.mxu0 0.0
    %135 = vmatpush1.xpose.msra.mxu0 %v104
    %136 = vmatprep.subr.mxu0 0.0
    %137 = vmatpush1.xpose.msra.mxu0 %v105
    %138 = vmatprep.subr.mxu0 0.0
    %139 = vmatpush1.xpose.msra.mxu0 0.0
    %140 = vmatprep.subr.mxu0 0.0
    %141 = vmatpush1.xpose.msra.mxu0 0.0
    %142 = vmatprep.subr.mxu0 0.0
    %143 = vmatpush1.xpose.msra.mxu0 0.0
    %144 = vmatprep.subr.mxu0 0.0
    %145 = vmatpush1.xpose.msra.mxu0 0.0
    %146 = vmatprep.subr.mxu0 0.0
    %147 = vmatpush1.xpose.msra.mxu0 0.0
    %148 = vmatprep.subr.mxu0 0.0
    %149 = vmatpush1.xpose.msra.mxu0 0.0
    %150 = vmatprep.subr.mxu0 0.0
    %151 = vmatpush1.xpose.msra.mxu0 0.0
    %152 = vmatprep.subr.mxu0 0.0
    %153 = vmatpush1.xpose.msra.mxu0 0.0
    %154 = vmatprep.subr.mxu0 0.0
    %155 = vmatpush1.xpose.msra.mxu0 0.0
    %156 = vmatprep.subr.mxu0 0.0
    %157 = vmatpush1.xpose.msra.mxu0 0.0
    %158 = vmatprep.subr.mxu0 0.0
    %159 = vmatpush1.xpose.msra.mxu0 0.0
    %160 = vmatprep.subr.mxu0 0.0
    %161 = vmatpush1.xpose.msra.mxu0 0.0
    %162 = vmatprep.subr.mxu0 0.0
    %163 = vmatpush1.xpose.msra.mxu0 0.0
    %164 = vmatprep.subr.mxu0 0.0
    %165 = vmatpush1.xpose.msra.mxu0 0.0
    %166 = vmatprep.subr.mxu0 0.0
    %167 = vmatpush1.xpose.msra.mxu0 0.0
    %168 = vmatprep.subr.mxu0 0.0
    %169 = vmatpush1.xpose.msra.mxu0 0.0
    %170 = vmatprep.mubr.f32.mxu0 0.0
    %171 = vmatmul.mubr.f32.gmra.mrb[0].mxu0 %v86
    %v172 = vpop.f32.mrb[0].mxu0
    %v173 = vadd.f32 0.0, %v172
    %v174 = vpop.f32.mrb[0].mxu0
    %175 = vmatprep.mubr.f32.mxu0 0.0
    %176 = vmatmul.mubr.f32.gmra.mrb[0].mxu0 %v87
    %v177 = vpop.f32.mrb[0].mxu0
    %v178 = vadd.f32 0.0, %v177
    %v179 = vpop.f32.mrb[0].mxu0
    %180 = vdwg.mxu0
    %v181 = vadd.f32 %v88, %v173
    %v182 = vadd.f32 %v89, %v178
    %183 = vst [vmem:[#allocation2] sm:$0xff] %v181
    %184 = vst [vmem:[#allocation2 + $0x8] sm:$0xff] %v182
    // Predicated region
    $region42: #{tpu_custom_call.1} parent=1 // pred_check
      %p185 = pneg %p79
    $region43: #{tpu_custom_call.1} parent=1 // pred_check_branch
      %187 = sbr.rel (%p185) target = $region45
    $region44: #{tpu_custom_call.1} parent=1 // pred_region
      %v188 = vld [vmem:[#allocation3] sm:$0xff]
      %v189 = vld [vmem:[#allocation3 + $0x8] sm:$0xff]
      %v190 = vld [vmem:[#allocation9] sm:$0xff]
      %v191 = vld [vmem:[#allocation9 + $0x8] sm:$0xff]
      %v192 = vld [vmem:[#allocation9 + $0x10] sm:$0xff]
      %v193 = vld [vmem:[#allocation9 + $0x18] sm:$0xff]
      %v194 = vld [vmem:[#allocation9 + $0x20] sm:$0xff]
      %v195 = vld [vmem:[#allocation9 + $0x28] sm:$0xff]
      %v196 = vld [vmem:[#allocation9 + $0x30] sm:$0xff]
      %v197 = vld [vmem:[#allocation9 + $0x38] sm:$0xff]
      %v198 = vld [vmem:[#allocation9 + $0x40] sm:$0xff]
      %v199 = vld [vmem:[#allocation9 + $0x48] sm:$0xff]
      %v200 = vld [vmem:[#allocation9 + $0x50] sm:$0xff]
      %v201 = vld [vmem:[#allocation9 + $0x58] sm:$0xff]
      %v202 = vld [vmem:[#allocation9 + $0x60] sm:$0xff]
      %v203 = vld [vmem:[#allocation9 + $0x68] sm:$0xff]
      %v204 = vld [vmem:[#allocation9 + $0x70] sm:$0xff]
      %v205 = vld [vmem:[#allocation9 + $0x78] sm:$0xff]
      %206 = vmatprep.subr.mxu0 0.0
      %207 = vmatpush1.xpose.msra.mxu0 %v190
      %208 = vmatprep.subr.mxu0 0.0
      %209 = vmatpush1.xpose.msra.mxu0 %v191
      %210 = vmatprep.subr.mxu0 0.0
      %211 = vmatpush1.xpose.msra.mxu0 %v192
      %212 = vmatprep.subr.mxu0 0.0
      %213 = vmatpush1.xpose.msra.mxu0 %v193
      %214 = vmatprep.subr.mxu0 0.0
      %215 = vmatpush1.xpose.msra.mxu0 %v194
      %216 = vmatprep.subr.mxu0 0.0
      %217 = vmatpush1.xpose.msra.mxu0 %v195
      %218 = vmatprep.subr.mxu0 0.0
      %219 = vmatpush1.xpose.msra.mxu0 %v196
      %220 = vmatprep.subr.mxu0 0.0
      %221 = vmatpush1.xpose.msra.mxu0 %v197
      %222 = vmatprep.subr.mxu0 0.0
      %223 = vmatpush1.xpose.msra.mxu0 %v198
      %224 = vmatprep.subr.mxu0 0.0
      %225 = vmatpush1.xpose.msra.mxu0 %v199
      %226 = vmatprep.subr.mxu0 0.0
      %227 = vmatpush1.xpose.msra.mxu0 %v200
      %228 = vmatprep.subr.mxu0 0.0
      %229 = vmatpush1.xpose.msra.mxu0 %v201
      %230 = vmatprep.subr.mxu0 0.0
      %231 = vmatpush1.xpose.msra.mxu0 %v202
      %232 = vmatprep.subr.mxu0 0.0
      %233 = vmatpush1.xpose.msra.mxu0 %v203
      %234 = vmatprep.subr.mxu0 0.0
      %235 = vmatpush1.xpose.msra.mxu0 %v204
      %236 = vmatprep.subr.mxu0 0.0
      %237 = vmatpush1.xpose.msra.mxu0 %v205
      %238 = vmatprep.subr.mxu0 0.0
      %239 = vmatpush1.xpose.msra.mxu0 0.0
      %240 = vmatprep.subr.mxu0 0.0
      %241 = vmatpush1.xpose.msra.mxu0 0.0
      %242 = vmatprep.subr.mxu0 0.0
      %243 = vmatpush1.xpose.msra.mxu0 0.0
      %244 = vmatprep.subr.mxu0 0.0
      %245 = vmatpush1.xpose.msra.mxu0 0.0
      %246 = vmatprep.subr.mxu0 0.0
      %247 = vmatpush1.xpose.msra.mxu0 0.0
      %248 = vmatprep.subr.mxu0 0.0
      %249 = vmatpush1.xpose.msra.mxu0 0.0
      %250 = vmatprep.subr.mxu0 0.0
      %251 = vmatpush1.xpose.msra.mxu0 0.0
      %252 = vmatprep.subr.mxu0 0.0
      %253 = vmatpush1.xpose.msra.mxu0 0.0
      %254 = vmatprep.subr.mxu0 0.0
      %255 = vmatpush1.xpose.msra.mxu0 0.0
      %256 = vmatprep.subr.mxu0 0.0
      %257 = vmatpush1.xpose.msra.mxu0 0.0
      %258 = vmatprep.subr.mxu0 0.0
      %259 = vmatpush1.xpose.msra.mxu0 0.0
      %260 = vmatprep.subr.mxu0 0.0
      %261 = vmatpush1.xpose.msra.mxu0 0.0
      %262 = vmatprep.subr.mxu0 0.0
      %263 = vmatpush1.xpose.msra.mxu0 0.0
      %264 = vmatprep.subr.mxu0 0.0
      %265 = vmatpush1.xpose.msra.mxu0 0.0
      %266 = vmatprep.subr.mxu0 0.0
      %267 = vmatpush1.xpose.msra.mxu0 0.0
      %268 = vmatprep.subr.mxu0 0.0
      %269 = vmatpush1.xpose.msra.mxu0 0.0
      %270 = vmatprep.mubr.f32.mxu0 0.0
      %271 = vmatmul.mubr.f32.gmra.mrb[0].mxu0 %v86
      %v272 = vpop.f32.mrb[0].mxu0
      %v273 = vadd.f32 0.0, %v272
      %v274 = vpop.f32.mrb[0].mxu0
      %275 = vmatprep.mubr.f32.mxu0 0.0
      %276 = vmatmul.mubr.f32.gmra.mrb[0].mxu0 %v87
      %v277 = vpop.f32.mrb[0].mxu0
      %v278 = vadd.f32 0.0, %v277
      %v279 = vpop.f32.mrb[0].mxu0
      %280 = vdwg.mxu0
      %v281 = vadd.f32 %v188, %v273
      %v282 = vadd.f32 %v189, %v278
      %283 = vst [vmem:[#allocation3] sm:$0xff] %v281
      %284 = vst [vmem:[#allocation3 + $0x8] sm:$0xff] %v282
    $region45: #{tpu_custom_call.1} parent=1 // pred_fallthru
      _
    // Predicated region
    $region46: #{tpu_custom_call.1} parent=1 // pred_check
      %p285 = pneg %p73
    $region47: #{tpu_custom_call.1} parent=1 // pred_check_branch
      %287 = sbr.rel (%p285) target = $region49
    $region48: #{tpu_custom_call.1} parent=1 // pred_region
      %v288 = vld [vmem:[#allocation3] sm:$0xff]
      %v289 = vld [vmem:[#allocation3 + $0x8] sm:$0xff]
      %v290 = vld [vmem:[#allocation2] sm:$0xff]
      %v291 = vld [vmem:[#allocation2 + $0x8] sm:$0xff]
      %v292 = vld [vmem:[#allocation10] sm:$0xff]
      %v293 = vld [vmem:[#allocation10 + $0x8] sm:$0xff]
      %v294 = vld [vmem:[#allocation10 + $0x10] sm:$0xff]
      %v295 = vld [vmem:[#allocation10 + $0x18] sm:$0xff]
      %v296 = vld [vmem:[#allocation10 + $0x20] sm:$0xff]
      %v297 = vld [vmem:[#allocation10 + $0x28] sm:$0xff]
      %v298 = vld [vmem:[#allocation10 + $0x30] sm:$0xff]
      %v299 = vld [vmem:[#allocation10 + $0x38] sm:$0xff]
      %v300 = vld [vmem:[#allocation10 + $0x40] sm:$0xff]
      %v301 = vld [vmem:[#allocation10 + $0x48] sm:$0xff]
      %v302 = vld [vmem:[#allocation10 + $0x50] sm:$0xff]
      %v303 = vld [vmem:[#allocation10 + $0x58] sm:$0xff]
      %v304 = vld [vmem:[#allocation10 + $0x60] sm:$0xff]
      %v305 = vld [vmem:[#allocation10 + $0x68] sm:$0xff]
      %v306 = vld [vmem:[#allocation10 + $0x70] sm:$0xff]
      %v307 = vld [vmem:[#allocation10 + $0x78] sm:$0xff]
      %308 = vmatprep.subr.mxu0 0.0
      %309 = vmatpush1.xpose.msra.mxu0 %v292
      %310 = vmatprep.subr.mxu0 0.0
      %311 = vmatpush1.xpose.msra.mxu0 %v293
      %312 = vmatprep.subr.mxu0 0.0
      %313 = vmatpush1.xpose.msra.mxu0 %v294
      %314 = vmatprep.subr.mxu0 0.0
      %315 = vmatpush1.xpose.msra.mxu0 %v295
      %316 = vmatprep.subr.mxu0 0.0
      %317 = vmatpush1.xpose.msra.mxu0 %v296
      %318 = vmatprep.subr.mxu0 0.0
      %319 = vmatpush1.xpose.msra.mxu0 %v297
      %320 = vmatprep.subr.mxu0 0.0
      %321 = vmatpush1.xpose.msra.mxu0 %v298
      %322 = vmatprep.subr.mxu0 0.0
      %323 = vmatpush1.xpose.msra.mxu0 %v299
      %324 = vmatprep.subr.mxu0 0.0
      %325 = vmatpush1.xpose.msra.mxu0 %v300
      %326 = vmatprep.subr.mxu0 0.0
      %327 = vmatpush1.xpose.msra.mxu0 %v301
      %328 = vmatprep.subr.mxu0 0.0
      %329 = vmatpush1.xpose.msra.mxu0 %v302
      %330 = vmatprep.subr.mxu0 0.0
      %331 = vmatpush1.xpose.msra.mxu0 %v303
      %332 = vmatprep.subr.mxu0 0.0
      %333 = vmatpush1.xpose.msra.mxu0 %v304
      %334 = vmatprep.subr.mxu0 0.0
      %335 = vmatpush1.xpose.msra.mxu0 %v305
      %336 = vmatprep.subr.mxu0 0.0
      %337 = vmatpush1.xpose.msra.mxu0 %v306
      %338 = vmatprep.subr.mxu0 0.0
      %339 = vmatpush1.xpose.msra.mxu0 %v307
      %340 = vmatprep.subr.mxu0 0.0
      %341 = vmatpush1.xpose.msra.mxu0 0.0
      %342 = vmatprep.subr.mxu0 0.0
      %343 = vmatpush1.xpose.msra.mxu0 0.0
      %344 = vmatprep.subr.mxu0 0.0
      %345 = vmatpush1.xpose.msra.mxu0 0.0
      %346 = vmatprep.subr.mxu0 0.0
      %347 = vmatpush1.xpose.msra.mxu0 0.0
      %348 = vmatprep.subr.mxu0 0.0
      %349 = vmatpush1.xpose.msra.mxu0 0.0
      %350 = vmatprep.subr.mxu0 0.0
      %351 = vmatpush1.xpose.msra.mxu0 0.0
      %352 = vmatprep.subr.mxu0 0.0
      %353 = vmatpush1.xpose.msra.mxu0 0.0
      %354 = vmatprep.subr.mxu0 0.0
      %355 = vmatpush1.xpose.msra.mxu0 0.0
      %356 = vmatprep.subr.mxu0 0.0
      %357 = vmatpush1.xpose.msra.mxu0 0.0
      %358 = vmatprep.subr.mxu0 0.0
      %359 = vmatpush1.xpose.msra.mxu0 0.0
      %360 = vmatprep.subr.mxu0 0.0
      %361 = vmatpush1.xpose.msra.mxu0 0.0
      %362 = vmatprep.subr.mxu0 0.0
      %363 = vmatpush1.xpose.msra.mxu0 0.0
      %364 = vmatprep.subr.mxu0 0.0
      %365 = vmatpush1.xpose.msra.mxu0 0.0
      %366 = vmatprep.subr.mxu0 0.0
      %367 = vmatpush1.xpose.msra.mxu0 0.0
      %368 = vmatprep.subr.mxu0 0.0
      %369 = vmatpush1.xpose.msra.mxu0 0.0
      %370 = vmatprep.subr.mxu0 0.0
      %371 = vmatpush1.xpose.msra.mxu0 0.0
      %372 = vmatprep.mubr.f32.mxu0 0.0
      %373 = vmatmul.mubr.f32.gmra.mrb[0].mxu0 %v288
      %v374 = vpop.f32.mrb[0].mxu0
      %v375 = vadd.f32 0.0, %v374
      %v376 = vpop.f32.mrb[0].mxu0
      %377 = vmatprep.mubr.f32.mxu0 0.0
      %378 = vmatmul.mubr.f32.gmra.mrb[0].mxu0 %v289
      %v379 = vpop.f32.mrb[0].mxu0
      %v380 = vadd.f32 0.0, %v379
      %v381 = vpop.f32.mrb[0].mxu0
      %382 = vdwg.mxu0
      %v383 = vadd.f32 %v290, %v375
      %v384 = vadd.f32 %v291, %v380
      %385 = vst [vmem:[#allocation12] sm:$0xff] %v383
      %386 = vst [vmem:[#allocation12 + $0x8] sm:$0xff] %v384
    $region49: #{tpu_custom_call.1} parent=1 // pred_fallthru
      _
    // Predicated region
    $region50: #{tpu_custom_call.1} parent=1 // pred_check
      _
    $region51: #{tpu_custom_call.1} parent=1 // pred_check_branch
      %388 = sbr.rel (0) target = $region53
    $region52: #{tpu_custom_call.1} parent=1 // pred_region
      %s390 = ssub.s32 256, 256
      %391 = vsyncadd [#allocation6], %s390
      %s392 = sshll.u32 [#allocation12], 4
      %s393 = int_to_ptr.vmem [resolvable:$true] %s392
      %398 = dma.vmem_to_hbm [thread:$0]  %s393, 256, %s4, [#allocation6], 128, 128, 8
    $region53: #{tpu_custom_call.1} parent=1 // pred_fallthru
      _
    // Predicated region
    $region54: #{tpu_custom_call.1} parent=1 // pred_check
      _
    $region55: #{tpu_custom_call.1} parent=1 // pred_check_branch
      %400 = sbr.rel (0) target = $region57
    $region56: #{tpu_custom_call.1} parent=1 // pred_region
      %401 = dma.done [#allocation6], 256
    $region57: #{tpu_custom_call.1} parent=1 // pred_fallthru
      _
    %402 = vsyncpa [#allocation5], 1
    %403 = vsyncpa [#allocation8], 1
    %404 = vsyncpa [#allocation11], 1
    %405 = vsyncpa [#allocation6], 1

</llo_original>
